<compile_context>
chip_gen: v7x
topology: tpu7x:2x2x1
jax: 0.10.0
libtpu: 0.0.40
codegen_flags: <defaults>
</compile_context>

<pallas_src>
import jax
import jax.numpy as jnp
from jax.experimental import pallas as pl
from jax.experimental.pallas import tpu as pltpu


def _round_up(x, m):
    return ((x + m - 1) // m) * m


def _gaussian_linear_decoder_kernel(z_ref, wt_ref, pm_ref):
    # z_ref : (TB, K)   block of latent codes
    # wt_ref: (K, TN)   weight block in canonical (n_input, n_output) layout (lane-dense)
    # pm_ref: (TB, TN)  mean output block
    pm = jnp.dot(z_ref[...], wt_ref[...], preferred_element_type=jnp.float32)
    pm_ref[...] = pm.astype(pm_ref.dtype)


def gaussian_linear_decoder(z, weight, sigma=1.0, *, tb=None, tn=None, out_dtype=None):
    """Forward pass of GaussianLinearDecoder.

    z      : (batch, n_input)
    weight : (n_output, n_input)   -- PyTorch nn.Linear layout (NOT transposed)
    returns (p_m, p_v), each (batch, n_output)
    """
    B, K = z.shape
    N, K2 = weight.shape
    assert K == K2, "weight must be (n_output, n_input)"

    if weight.dtype != z.dtype:
        weight = weight.astype(z.dtype)
    out_dtype = z.dtype if out_dtype is None else out_dtype
    itemsize = jnp.dtype(out_dtype).itemsize

    # One-time transpose to canonical (K, N) so the weight tile is lane-dense.
    w_t = weight.T  # (K, N)

    # ---- Tile plan: lane-dense, (8,128)-aligned (or full-extent) blocks. ----
    if tb is None:
        tb = B if B <= 512 else 512          # 512 % 8 == 0
    if tn is None:
        tn = N if N <= 4096 else 4096        # 4096 % 128 == 0
        # Guarantee >=2 grid blocks when the whole op would be a single block,
        # so both v7x TensorCores get work (harmless on v5e/v6e).
        if B <= tb and tn == N and N >= 256:
            tn = _round_up(pl.cdiv(N, 2), 128)

    grid_j = pl.cdiv(N, tn)   # outer: output-feature blocks (weight resident)
    grid_i = pl.cdiv(B, tb)   # inner: batch blocks (tiny z tile re-fetched)
    grid = (grid_j, grid_i)

    # VMEM budget: double-buffered z, w_t and p_m tiles + 1.5x headroom for
    # compiler internals.  With the caps above this stays under ~32 MiB, so it
    # is valid on v5e/v6e (128 MiB) and v7x (64 MiB physical) alike.
    vmem_bytes = 2 * (tb * K + K * tn + tb * tn) * itemsize
    vmem_limit = int(min(max(vmem_bytes + vmem_bytes // 2, 4 * 1024 * 1024),
                         48 * 1024 * 1024))

    # Accurate advisory traffic: weight read once, z re-read grid_j times,
    # output written once.
    cost = pl.CostEstimate(
        flops=2 * B * K * N,
        transcendentals=0,
        bytes_accessed=itemsize * (grid_j * B * K + K * N + B * N),
    )

    p_m = pl.pallas_call(
        _gaussian_linear_decoder_kernel,
        out_shape=jax.ShapeDtypeStruct((B, N), out_dtype),
        grid_spec=pltpu.PrefetchScalarGridSpec(
            num_scalar_prefetch=0,
            grid=grid,
            in_specs=[
                pl.BlockSpec((tb, K), lambda j, i: (i, 0)),   # z: varies only with inner axis
                pl.BlockSpec((K, tn), lambda j, i: (0, j)),   # w_t: constant across inner axis
            ],
            out_specs=pl.BlockSpec((tb, tn), lambda j, i: (i, j)),
        ),
        compiler_params=pltpu.CompilerParams(
            dimension_semantics=("parallel", "parallel"),
            vmem_limit_bytes=vmem_limit,
        ),
        cost_estimate=cost,
    )(z, w_t)

    # Constant variance: produced outside the kernel (fusable XLA op); changing
    # sigma never triggers a Mosaic recompile.
    p_v = jnp.full((B, N), sigma, dtype=out_dtype)
    return p_m, p_v


if __name__ == "__main__":
    key = jax.random.PRNGKey(0)

    def _check(batch, n_input, n_output, sigma, tb=None, tn=None):
        kz, kw = jax.random.split(jax.random.fold_in(key, batch * 131 + n_output))
        z = jax.random.normal(kz, (batch, n_input), dtype=jnp.float32)
        # Deterministic synthetic weight in PyTorch Linear layout (n_output, n_input).
        weight = jax.random.normal(kw, (n_output, n_input), dtype=jnp.float32) * 0.05

        p_m, p_v = gaussian_linear_decoder(z, weight, sigma=sigma, tb=tb, tn=tn)
        jax.block_until_ready((p_m, p_v))

        ref_m = jnp.dot(z, weight.T, precision=jax.lax.Precision.HIGHEST)
        ref_v = sigma * jnp.ones_like(ref_m)
        assert p_m.shape == (batch, n_output) and p_v.shape == (batch, n_output)
        assert jnp.allclose(p_m, ref_m, atol=1e-4, rtol=1e-4), (
            f"mismatch at batch={batch} n_input={n_input} n_output={n_output}")
        assert jnp.allclose(p_v, ref_v)

    # Single-batch-block case: N >= 256 triggers the megacore split (grid=(2,1)).
    _check(batch=8, n_input=32, n_output=256, sigma=1.0)
    # Larger gene axis, still one batch block: tn=2048 -> grid=(2,1).
    _check(batch=16, n_input=64, n_output=4096, sigma=0.5)
    # Explicit small tiles to exercise multi-block grid on both axes, including
    # partial boundary blocks (20 % 8 != 0, 384 % 256 != 0).
    _check(batch=20, n_input=32, n_output=384, sigma=2.0, tb=8, tn=256)

    print("KERNEL_OK")
</pallas_src>

<mosaic_0001>
module attributes {stable_mosaic.version = 11 : i64} {
  func.func @_gaussian_linear_decoder_kernel(%arg0: i32, %arg1: i32, %arg2: memref<8x32xf32, #tpu.memory_space<vmem>>, %arg3: memref<32x128xf32, #tpu.memory_space<vmem>>, %arg4: memref<8x128xf32, #tpu.memory_space<vmem>>) attributes {dimension_semantics = [#tpu.dimension_semantics<parallel>, #tpu.dimension_semantics<parallel>], iteration_bounds = array<i64: 2, 1>, scalar_prefetch = 0 : i64, scratch_operands = 0 : i64, tpu.core_type = #tpu.core_type<tc>, window_params = [{transform_indices = @transform_0, window_bounds = array<i64: 8, 32>}, {transform_indices = @transform_1, window_bounds = array<i64: 32, 128>}, {transform_indices = @transform_2, window_bounds = array<i64: 8, 128>}]} {
    %c0 = arith.constant 0 : index
    %c0_0 = arith.constant 0 : index
    %0 = vector.load %arg2[%c0, %c0_0] : memref<8x32xf32, #tpu.memory_space<vmem>>, vector<8x32xf32>
    %c0_1 = arith.constant 0 : index
    %c0_2 = arith.constant 0 : index
    %1 = vector.load %arg3[%c0_1, %c0_2] : memref<32x128xf32, #tpu.memory_space<vmem>>, vector<32x128xf32>
    %cst = arith.constant dense<0.000000e+00> : vector<8x128xf32>
    %2 = tpu.matmul %0, %1, %cst {dimension_numbers = #tpu.dot_dimension_numbers<[1], [0], [0], [1], [0, 0, 1, 1], [], []>} : vector<8x32xf32>, vector<32x128xf32>, vector<8x128xf32> -> vector<8x128xf32>
    %c0_3 = arith.constant 0 : index
    %c0_4 = arith.constant 0 : index
    %3 = vector.load %arg4[%c0_3, %c0_4] : memref<8x128xf32, #tpu.memory_space<vmem>>, vector<8x128xf32>
    tpu.vector_store %arg4[%c0_3, %c0_4], %2 {strides = array<i32>} : memref<8x128xf32, #tpu.memory_space<vmem>>, vector<8x128xf32>,
    return
  }
  func.func @transform_0(%arg0: i32, %arg1: i32) -> (i32, i32) {
    %c0_i32 = arith.constant 0 : i32
    %c0_i32_0 = arith.constant 0 : i32
    return %arg1, %c0_i32 : i32, i32
  }
  func.func @transform_1(%arg0: i32, %arg1: i32) -> (i32, i32) {
    %c0_i32 = arith.constant 0 : i32
    %c0_i32_0 = arith.constant 0 : i32
    return %c0_i32, %arg0 : i32, i32
  }
  func.func @transform_2(%arg0: i32, %arg1: i32) -> (i32, i32) {
    %c0_i32 = arith.constant 0 : i32
    return %arg1, %arg0 : i32, i32
  }
}

</mosaic_0001>

<llo_original>
// kernel: tpu_custom_call.1
$region0: #{tpu_custom_call.1}
  #allocation0 [shape = 'u32[]', space=smem, size = 0x4, offset = 0x4, fixed_abs, tag = 'smem constant byte address 0x4 - core index']
  #allocation1 [shape = 'u32[144,128]{1,0:T(1,128)}', space=vmem, size = 0x12000, scoped, tag = 'internal scratch']
  %s0 = inlined_call_operand.hbm [shape: f32[8,32], index: 0, kind: input, shape index: {}]
  %s1 = inlined_call_operand.hbm [shape: f32[32,256], index: 1, kind: input, shape index: {}]
  %s2 = inlined_call_operand.hbm [shape: f32[8,256], index: 2, kind: output, shape index: {}]
  %s3 = sld [smem:[#allocation0]]
  $region49: #{tpu_custom_call.1} parent=0
    _
  %s5 = ssub.s32 1, %s3
  %s6 = scalar_select 0, %s5, %s3
  $region1: #{tpu_custom_call.1} parent=0
    #allocation2 [shape = 'u8[4096]{0}', space=vmem, size = 0x1000, scoped, tag = 'input window, operand 0, single buffered']
    #allocation3 [shape = 's32[2]{0}', space=sflag, size = 0x8, scoped, tag = 'scoped memory for tpu_custom_call.1']
    #allocation4 [shape = 's32[2]{0}', space=sflag, size = 0x8, scoped, tag = 'scoped memory for tpu_custom_call.1']
    #allocation5 [shape = 'u8[32768]{0}', space=vmem, size = 0x8000, scoped, tag = 'input window, operand 1']
    #allocation6 [shape = 's32[2]{0}', space=sflag, size = 0x8, scoped, tag = 'scoped memory for tpu_custom_call.1']
    #allocation7 [shape = 'u8[8192]{0}', space=vmem, size = 0x2000, scoped, tag = 'output window, operand 0']
    %7 = vsyncpa [#allocation3], 0
    %8 = vsyncpa [#allocation6], 0
    %s9 = scalar_lea.sflag [#allocation6], 1
    %10 = vsyncpa %s9, 0
    %11 = vsyncpa [#allocation4], 0
    %s12 = scalar_lea.sflag [#allocation4], 1
    %13 = vsyncpa %s12, 0
    loop: start=0, step=1, limit=4
    $region2: #{tpu_custom_call.1} parent=1 // loop_pre_header
      _
    $region3: #{tpu_custom_call.1} parent=1 // loop_header
      %s15 = sphi 0, %s19
      %p16 = scmp.ge.s32.totalorder %s15, 4
      %s22 = sphi 0, %s34
      %s23 = sphi 0, %s30
      %s24 = sphi 0, %s22
      %s25 = sphi 0, %s23
      %s26 = sphi 0, %s24
      %s27 = sphi 0, %s25
      %s37 = sphi 0, %s39
      %s40 = sphi 0, %s37
      %s41 = sphi 0, %s40
      %s57 = sphi 0, %s41
      %s63 = sphi 0, %s65
      %s66 = sphi 0, %s63
      %s67 = sphi 0, %s66
      %s83 = sphi 0, %s67
      %s91 = sphi 0, %s93
      %s94 = sphi 0, %s91
      %s95 = sphi 0, %s94
      %s111 = sphi 0, %s95
    $region4: #{tpu_custom_call.1} parent=1 // loop_header_branch
      %18 = sbr.rel (%p16) target = $region8
    $region5: #{tpu_custom_call.1} parent=1 // loop_body
      %s20 = ssub.s32 %s15, 1
      %s21 = ssub.s32 %s15, 2
      %s28 = sadd.s32 1, %s23
      %p29 = scmp.ge.s32.totalorder %s28, 1
      %s30 = scalar_select %p29, 0, %s28
      %s31 = sadd.s32 1, %s22
      %s32 = scalar_select %p29, %s31, %s22
      %p33 = scmp.ge.s32.totalorder %s32, 2
      %s34 = scalar_select %p33, 0, %s32
      %s35 = ssub.s32 %s23, %s30
      %p36 = scmp.eq.s32.totalorder %s35, 0
      %s38 = sadd.s32 %s37, 1
      %s39 = scalar_select %p36, %s37, %s38
      %p42 = pneg %p36
      %p43 = scmp.eq.s32.totalorder %s15, 1
      %p44 = por %p42, %p43
      %p45 = scmp.ne.s32.totalorder %s37, %s40
      %p46 = scmp.eq.s32.totalorder %s15, 0
      %p47 = por %p45, %p46
      %p48 = scmp.ne.s32.totalorder %s37, %s40
      %p49 = scmp.eq.s32.totalorder %s20, 1
      %p50 = por %p48, %p49
      %p51 = scmp.ne.s32.totalorder %s40, %s41
      %p52 = scmp.eq.s32.totalorder %s20, 0
      %p53 = por %p51, %p52
      %p54 = scmp.ne.s32.totalorder %s40, %s41
      %p55 = scmp.eq.s32.totalorder %s21, 1
      %p56 = por %p54, %p55
      %p58 = scmp.ne.s32.totalorder %s41, %s57
      %p59 = scmp.eq.s32.totalorder %s21, 0
      %p60 = por %p58, %p59
      %s61 = ssub.s32 %s22, %s34
      %p62 = scmp.eq.s32.totalorder %s61, 0
      %s64 = sadd.s32 %s63, 1
      %s65 = scalar_select %p62, %s63, %s64
      %p68 = pneg %p62
      %p69 = scmp.eq.s32.totalorder %s15, 1
      %p70 = por %p68, %p69
      %p71 = scmp.ne.s32.totalorder %s63, %s66
      %p72 = scmp.eq.s32.totalorder %s15, 0
      %p73 = por %p71, %p72
      %p74 = scmp.ne.s32.totalorder %s63, %s66
      %p75 = scmp.eq.s32.totalorder %s20, 1
      %p76 = por %p74, %p75
      %p77 = scmp.ne.s32.totalorder %s66, %s67
      %p78 = scmp.eq.s32.totalorder %s20, 0
      %p79 = por %p77, %p78
      %p80 = scmp.ne.s32.totalorder %s66, %s67
      %p81 = scmp.eq.s32.totalorder %s21, 1
      %p82 = por %p80, %p81
      %p84 = scmp.ne.s32.totalorder %s67, %s83
      %p85 = scmp.eq.s32.totalorder %s21, 0
      %p86 = por %p84, %p85
      %s87 = ssub.s32 %s23, %s30
      %s88 = ssub.s32 %s22, %s34
      %s89 = sor.u32 %s87, %s88
      %p90 = scmp.eq.s32.totalorder %s89, 0
      %s92 = sadd.s32 %s91, 1
      %s93 = scalar_select %p90, %s91, %s92
      %p96 = pneg %p90
      %p97 = scmp.eq.s32.totalorder %s15, 1
      %p98 = por %p96, %p97
      %p99 = scmp.ne.s32.totalorder %s91, %s94
      %p100 = scmp.eq.s32.totalorder %s15, 0
      %p101 = por %p99, %p100
      %p102 = scmp.ne.s32.totalorder %s91, %s94
      %p103 = scmp.eq.s32.totalorder %s20, 1
      %p104 = por %p102, %p103
      %p105 = scmp.ne.s32.totalorder %s94, %s95
      %p106 = scmp.eq.s32.totalorder %s20, 0
      %p107 = por %p105, %p106
      %p108 = scmp.ne.s32.totalorder %s94, %s95
      %p109 = scmp.eq.s32.totalorder %s21, 1
      %p110 = por %p108, %p109
      %p112 = scmp.ne.s32.totalorder %s95, %s111
      %p113 = scmp.eq.s32.totalorder %s21, 0
      %p114 = por %p112, %p113
      %p115 = scmp.le.s32.totalorder 1, %s15
      %p116 = scmp.lt.s32.totalorder %s15, 3
      %p117 = pnand %p115, %p116
      %p118 = pneg %p117
      // Predicated region
      $region9: #{tpu_custom_call.1} parent=5 // pred_check
        _
      $region10: #{tpu_custom_call.1} parent=5 // pred_check_branch
        %120 = sbr.rel (%p117) target = $region12
      $region11: #{tpu_custom_call.1} parent=5 // pred_region
        %s121 = ssub.s32 %s15, 1
        // Predicated region
        $region13: #{tpu_custom_call.1} parent=11 // pred_check
          %p122 = pneg %p53
        $region14: #{tpu_custom_call.1} parent=11 // pred_check_branch
          %124 = sbr.rel (%p122) target = $region16
        $region15: #{tpu_custom_call.1} parent=11 // pred_region
          %s126 = ssub.s32 128, 128
          %127 = vsyncadd [#allocation3], %s126
          %s128 = smul.addr %s25, 128
          %s129 = scalar_lea.hbm %s0, %s128
          %s131 = sshll.u32 [#allocation2], 4
          %s132 = int_to_ptr.vmem [resolvable:$true] %s131
          %134 = dma.hbm_to_vmem [thread:$0]  %s129, 128, %s132, [#allocation3]
        $region16: #{tpu_custom_call.1} parent=11 // pred_fallthru
          _
      $region12: #{tpu_custom_call.1} parent=5 // pred_fallthru
        _
      %p135 = scmp.lt.s32.totalorder %s15, 2
      // Predicated region
      $region17: #{tpu_custom_call.1} parent=5 // pred_check
        %p136 = pneg %p135
      $region18: #{tpu_custom_call.1} parent=5 // pred_check_branch
        %138 = sbr.rel (%p136) target = $region20
      $region19: #{tpu_custom_call.1} parent=5 // pred_region
        // Predicated region
        $region21: #{tpu_custom_call.1} parent=19 // pred_check
          %p139 = pneg %p73
        $region22: #{tpu_custom_call.1} parent=19 // pred_check_branch
          %141 = sbr.rel (%p139) target = $region24
        $region23: #{tpu_custom_call.1} parent=19 // pred_region
          %s142 = sand.u32 %s63, 1
          %s143 = scalar_lea.sflag [#allocation6], %s142
          %s144 = sand.u32 %s63, 1
          %s145 = smul.addr %s144, 32
          %s146 = scalar_lea.vmem [#allocation5], %s145
          %s148 = ssub.s32 512, 512
          %149 = vsyncadd %s143, %s148
          %s150 = smul.addr %s22, 128
          %s151 = scalar_lea.hbm %s1, %s150
          %s152 = sshll.u32 %s146, 4
          %s153 = int_to_ptr.vmem [resolvable:$true] %s152
          %158 = dma.hbm_to_vmem [thread:$0]  %s151, 512, %s153, %s143, 256, 128, 8
        $region24: #{tpu_custom_call.1} parent=19 // pred_fallthru
          _
      $region20: #{tpu_custom_call.1} parent=5 // pred_fallthru
        _
      %p159 = scmp.le.s32.totalorder 1, %s15
      %p160 = scmp.lt.s32.totalorder %s15, 3
      %p161 = pnand %p159, %p160
      %p162 = pneg %p161
      // Predicated region
      $region25: #{tpu_custom_call.1} parent=5 // pred_check
        _
      $region26: #{tpu_custom_call.1} parent=5 // pred_check_branch
        %164 = sbr.rel (%p161) target = $region28
      $region27: #{tpu_custom_call.1} parent=5 // pred_region
        %s165 = ssub.s32 %s15, 1
        // Predicated region
        $region29: #{tpu_custom_call.1} parent=27 // pred_check
          %p166 = pneg %p53
        $region30: #{tpu_custom_call.1} parent=27 // pred_check_branch
          %168 = sbr.rel (%p166) target = $region32
        $region31: #{tpu_custom_call.1} parent=27 // pred_region
          %169 = dma.done [#allocation3], 128
        $region32: #{tpu_custom_call.1} parent=27 // pred_fallthru
          _
        %s170 = sand.u32 %s66, 1
        %s171 = scalar_lea.sflag [#allocation6], %s170
        %s172 = sand.u32 %s66, 1
        %s173 = smul.addr %s172, 32
        %s174 = scalar_lea.vmem [#allocation5], %s173
        // Predicated region
        $region33: #{tpu_custom_call.1} parent=27 // pred_check
          %p175 = pneg %p79
        $region34: #{tpu_custom_call.1} parent=27 // pred_check_branch
          %177 = sbr.rel (%p175) target = $region36
        $region35: #{tpu_custom_call.1} parent=27 // pred_region
          %178 = dma.done %s171, 512
        $region36: #{tpu_custom_call.1} parent=27 // pred_fallthru
          _
        %p179 = pneg %p53
        %p180 = pneg %p50
        %s181 = sand.u32 %s66, 1
        %s182 = scalar_lea.sflag [#allocation6], %s181
        %s183 = sand.u32 %s66, 1
        %s184 = smul.addr %s183, 32
        %s185 = scalar_lea.vmem [#allocation5], %s184
        %p186 = pneg %p79
        %p187 = pneg %p76
        %p188 = pneg %p107
        %p189 = pneg %p104
        %s190 = sand.u32 %s94, 1
        %s191 = scalar_lea.sflag [#allocation4], %s190
        %s192 = sand.u32 %s94, 1
        %s193 = smul.addr %s192, 8
        %s194 = scalar_lea.vmem [#allocation7], %s193
        %v195 = vld [vmem:[#allocation2] sm:$0xff]
        %v196 = vld [vmem:[%s174] sm:$0xff]
        %v197 = vld [vmem:[%s174 + $0x8] sm:$0xff]
        %v198 = vld [vmem:[%s174 + $0x10] sm:$0xff]
        %v199 = vld [vmem:[%s174 + $0x18] sm:$0xff]
        %vm200 = vcmask 261120
        %v202 = vsel %vm200, %v195, 0
        %204 = vmatprep.subr.mxu0 0.0
        %205 = vmatpush1.msra.mxu0 %v196
        %206 = vmatprep.subr.mxu0 0.0
        %207 = vmatpush1.msra.mxu0 %v197
        %208 = vmatprep.subr.mxu0 0.0
        %209 = vmatpush1.msra.mxu0 %v198
        %210 = vmatprep.subr.mxu0 0.0
        %211 = vmatpush1.msra.mxu0 %v199
        %212 = vmatprep.subr.mxu0 0.0
        %213 = vmatpush1.msra.mxu0 0.0
        %214 = vmatprep.subr.mxu0 0.0
        %215 = vmatpush1.msra.mxu0 0.0
        %216 = vmatprep.subr.mxu0 0.0
        %217 = vmatpush1.msra.mxu0 0.0
        %218 = vmatprep.subr.mxu0 0.0
        %219 = vmatpush1.msra.mxu0 0.0
        %220 = vmatprep.subr.mxu0 0.0
        %221 = vmatpush1.msra.mxu0 0.0
        %222 = vmatprep.subr.mxu0 0.0
        %223 = vmatpush1.msra.mxu0 0.0
        %224 = vmatprep.subr.mxu0 0.0
        %225 = vmatpush1.msra.mxu0 0.0
        %226 = vmatprep.subr.mxu0 0.0
        %227 = vmatpush1.msra.mxu0 0.0
        %228 = vmatprep.subr.mxu0 0.0
        %229 = vmatpush1.msra.mxu0 0.0
        %230 = vmatprep.subr.mxu0 0.0
        %231 = vmatpush1.msra.mxu0 0.0
        %232 = vmatprep.subr.mxu0 0.0
        %233 = vmatpush1.msra.mxu0 0.0
        %234 = vmatprep.subr.mxu0 0.0
        %235 = vmatpush1.msra.mxu0 0.0
        %236 = vmatprep.subr.mxu0 0.0
        %237 = vmatpush1.msra.mxu0 0.0
        %238 = vmatprep.subr.mxu0 0.0
        %239 = vmatpush1.msra.mxu0 0.0
        %240 = vmatprep.subr.mxu0 0.0
        %241 = vmatpush1.msra.mxu0 0.0
        %242 = vmatprep.subr.mxu0 0.0
        %243 = vmatpush1.msra.mxu0 0.0
        %244 = vmatprep.subr.mxu0 0.0
        %245 = vmatpush1.msra.mxu0 0.0
        %246 = vmatprep.subr.mxu0 0.0
        %247 = vmatpush1.msra.mxu0 0.0
        %248 = vmatprep.subr.mxu0 0.0
        %249 = vmatpush1.msra.mxu0 0.0
        %250 = vmatprep.subr.mxu0 0.0
        %251 = vmatpush1.msra.mxu0 0.0
        %252 = vmatprep.subr.mxu0 0.0
        %253 = vmatpush1.msra.mxu0 0.0
        %254 = vmatprep.subr.mxu0 0.0
        %255 = vmatpush1.msra.mxu0 0.0
        %256 = vmatprep.subr.mxu0 0.0
        %257 = vmatpush1.msra.mxu0 0.0
        %258 = vmatprep.subr.mxu0 0.0
        %259 = vmatpush1.msra.mxu0 0.0
        %260 = vmatprep.subr.mxu0 0.0
        %261 = vmatpush1.msra.mxu0 0.0
        %262 = vmatprep.subr.mxu0 0.0
        %263 = vmatpush1.msra.mxu0 0.0
        %264 = vmatprep.subr.mxu0 0.0
        %265 = vmatpush1.msra.mxu0 0.0
        %266 = vmatprep.subr.mxu0 0.0
        %267 = vmatpush1.msra.mxu0 0.0
        %268 = vmatprep.mubr.f32.mxu0 0.0
        %269 = vmatmul.mubr.f32.gmra.mrb[0].mxu0 %v202
        %v270 = vpop.f32.mrb[0].mxu0
        %v271 = vadd.f32 0.0, %v270
        %v272 = vpop.f32.mrb[0].mxu0
        %273 = vdwg.mxu0
        %274 = vst [vmem:[%s194] sm:$0xff] %v271
        %s275 = sand.u32 %s94, 1
        %s276 = scalar_lea.sflag [#allocation4], %s275
        %s277 = sand.u32 %s94, 1
        %s278 = smul.addr %s277, 8
        %s279 = scalar_lea.vmem [#allocation7], %s278
        // Predicated region
        $region37: #{tpu_custom_call.1} parent=27 // pred_check
          %p280 = pneg %p104
        $region38: #{tpu_custom_call.1} parent=27 // pred_check_branch
          %282 = sbr.rel (%p280) target = $region40
        $region39: #{tpu_custom_call.1} parent=27 // pred_region
          %s284 = ssub.s32 128, 128
          %285 = vsyncadd %s276, %s284
          %s286 = smul.addr %s25, 2
          %s287 = sadd.s32 %s24, %s286
          %s288 = smul.addr %s287, 128
          %s289 = scalar_lea.hbm %s2, %s288
          %s291 = sshll.u32 %s279, 4
          %s292 = int_to_ptr.vmem [resolvable:$true] %s291
          %294 = dma.vmem_to_hbm [thread:$0]  %s292, 128, %s289, %s276
        $region40: #{tpu_custom_call.1} parent=27 // pred_fallthru
          _
      $region28: #{tpu_custom_call.1} parent=5 // pred_fallthru
        _
      %p295 = scmp.le.s32.totalorder 2, %s15
      // Predicated region
      $region41: #{tpu_custom_call.1} parent=5 // pred_check
        %p296 = pneg %p295
      $region42: #{tpu_custom_call.1} parent=5 // pred_check_branch
        %298 = sbr.rel (%p296) target = $region44
      $region43: #{tpu_custom_call.1} parent=5 // pred_region
        %s299 = ssub.s32 %s15, 2
        // Predicated region
        $region45: #{tpu_custom_call.1} parent=43 // pred_check
          %p300 = pneg %p110
        $region46: #{tpu_custom_call.1} parent=43 // pred_check_branch
          %302 = sbr.rel (%p300) target = $region48
        $region47: #{tpu_custom_call.1} parent=43 // pred_region
          %s303 = sand.u32 %s95, 1
          %s304 = scalar_lea.sflag [#allocation4], %s303
          %s305 = sand.u32 %s95, 1
          %s306 = smul.addr %s305, 8
          %s307 = scalar_lea.vmem [#allocation7], %s306
          %308 = dma.done %s304, 128
        $region48: #{tpu_custom_call.1} parent=43 // pred_fallthru
          _
      $region44: #{tpu_custom_call.1} parent=5 // pred_fallthru
        _
    $region6: #{tpu_custom_call.1} parent=1 // loop_footer
      %s19 = sadd.s32 1, %s15
    $region7: #{tpu_custom_call.1} parent=1 // loop_footer_branch
      %14 = sbr.rel target = $region3
    $region8: #{tpu_custom_call.1} parent=1 // loop_exit
      _
    %309 = vsyncpa [#allocation3], 1
    %s310 = scalar_lea.sflag [#allocation3], 1
    %311 = vsyncpa %s310, 1
    %312 = vsyncpa [#allocation6], 1
    %s313 = scalar_lea.sflag [#allocation6], 1
    %314 = vsyncpa %s313, 1
    %315 = vsyncpa [#allocation4], 1
    %s316 = scalar_lea.sflag [#allocation4], 1
    %317 = vsyncpa %s316, 1

</llo_original>
